<compile_context>
chip_gen: v7x
topology: tpu7x:2x2x1
jax: 0.10.0
libtpu: 0.0.40
codegen_flags: <defaults>
</compile_context>

<pallas_src>
import jax
import jax.numpy as jnp
from jax import lax
from jax.experimental import pallas as pl
from jax.experimental.pallas import tpu as pltpu
import numpy as np

EPS = 1e-5          # nn.BatchNorm2d default eps
_VPU_CONV_MAX_K = 16  # below this contraction size, skip the MXU entirely


def fusion_kernel(x_ref, p_ref, o_ref):
    # x_ref : (N, Cin, S)   channels on sublane, spatial on lane
    # p_ref : (Cout, Cin + 2*Cout + 6) packed [w1 | w2 | w3 | g1,be1,g2,be2,g3,be3]
    # o_ref : (N, Cout, S)
    N, Cin, S = x_ref.shape
    Cout = o_ref.shape[1]
    L = N * S
    inv_l = 1.0 / float(L)

    p = p_ref[...]                                   # (Cout, Cin+2*Cout+6)
    w1 = p[:, 0:Cin]                                 # (Cout, Cin)
    w2 = p[:, Cin:Cin + Cout]                        # (Cout, Cout)
    w3 = p[:, Cin + Cout:Cin + 2 * Cout]             # (Cout, Cout)
    v0 = Cin + 2 * Cout                              # start of BN vectors

    # Lane-concatenated activation slab: (Cin, N*S).  S is a multiple of 128
    # here, so the concat and every later op stay lane-dense.
    h = jnp.concatenate([x_ref[n] for n in range(N)], axis=1)

    def conv1x1(w, h):
        # w: (Cout, K), h: (K, L).  Conv bias intentionally omitted: it
        # cancels exactly under batch-statistic BN (mean subtraction).
        K = h.shape[0]
        if K <= _VPU_CONV_MAX_K:
            # Tiny-K path: K broadcast-FMAs on the VPU; avoids MXU push +
            # result-FIFO drain latency for a near-empty matmul.
            acc = w[:, 0:1] * h[0:1, :]
            for k in range(1, K):
                acc = acc + w[:, k:k + 1] * h[k:k + 1, :]
            return acc
        # Production-channel path: feed the MXU.
        # TODO(synk): cast operands to bf16 on v5e (f32 matmul is multi-pass).
        return jnp.dot(w, h, preferred_element_type=jnp.float32)

    def stage(h, w, col):
        g = p[:, col:col + 1]          # BN weight (Cout, 1)
        be = p[:, col + 1:col + 2]     # BN bias   (Cout, 1)

        y = conv1x1(w, h)              # (Cout, L) lane-dense

        # Single-pass training-mode BN statistics over all N*S lanes.
        s1 = jnp.sum(y, axis=1, keepdims=True)
        s2 = jnp.sum(y * y, axis=1, keepdims=True)
        mu = s1 * inv_l
        var = jnp.maximum(s2 * inv_l - mu * mu, 0.0)

        # Fold BN affine into one per-channel scale/bias FMA (+ ReLU).
        scale = g * lax.rsqrt(var + EPS)   # exact rsqrt -> EUP slot
        bias = be - mu * scale
        return jnp.maximum(y * scale + bias, 0.0)

    h = stage(h, w1, v0 + 0)   # conv1 + bn1 + relu1
    h = stage(h, w2, v0 + 2)   # conv2 + bn2 + relu2
    h = stage(h, w3, v0 + 4)   # conv3 + bn3 + relu3

    # Unmasked lane-dense stores (S multiple of 128), static slices.
    for n in range(N):
        o_ref[n] = h[:, n * S:(n + 1) * S].astype(o_ref.dtype)


def _full_spec(shape):
    nd = len(shape)
    return pl.BlockSpec(shape, lambda i, _nd=nd: (0,) * _nd)


def fusion_ssd_forward(x_nchw, params):
    """x_nchw: (N, Cin, H, W) float32 -> (N, Cout, H, W) float32."""
    N, Cin, H, W = x_nchw.shape
    S = H * W
    Cout = params["w1"].shape[0]

    # NCHW -> (N, Cin, H*W): pure reshape, no transpose / data movement.
    x = x_nchw.reshape(N, Cin, S)

    # Pack all weights + BN affines into ONE array (2 input DMAs total).
    # Conv biases are dropped here: they cancel under batch-stat BN.
    packed = jnp.concatenate(
        [params["w1"], params["w2"], params["w3"],
         jnp.stack([params["g1"], params["be1"],
                    params["g2"], params["be2"],
                    params["g3"], params["be3"]], axis=1)],
        axis=1)  # (Cout, Cin + 2*Cout + 6)

    out = pl.pallas_call(
        fusion_kernel,
        out_shape=jax.ShapeDtypeStruct((N, Cout, S), jnp.float32),
        grid=(1,),
        in_specs=[_full_spec(x.shape), _full_spec(packed.shape)],
        out_specs=_full_spec((N, Cout, S)),
        compiler_params=pltpu.CompilerParams(
            dimension_semantics=("arbitrary",)),
    )(x, packed)

    # (N, Cout, H*W) -> NCHW: pure reshape.
    return out.reshape(N, Cout, H, W)


def reference_forward(x_nchw, params):
    """Pure-JAX reference mirroring the PyTorch module (training-mode BN),
    INCLUDING the conv biases (which cancel under batch-stat BN)."""
    N, Cin, H, W = x_nchw.shape
    h = x_nchw.reshape(N, Cin, H * W)

    def conv(h, w, b):
        return jnp.einsum("oc,ncs->nos", w, h) + b[None, :, None]

    def bn(h, g, be):
        mu = jnp.mean(h, axis=(0, 2), keepdims=True)
        var = jnp.mean((h - mu) ** 2, axis=(0, 2), keepdims=True)
        return (h - mu) / jnp.sqrt(var + EPS) * g[None, :, None] + be[None, :, None]

    h = jnp.maximum(bn(conv(h, params["w1"], params["b1"]),
                       params["g1"], params["be1"]), 0.0)
    h = jnp.maximum(bn(conv(h, params["w2"], params["b2"]),
                       params["g2"], params["be2"]), 0.0)
    h = jnp.maximum(bn(conv(h, params["w3"], params["b3"]),
                       params["g3"], params["be3"]), 0.0)
    Cout = h.shape[1]
    return h.reshape(N, Cout, H, W)


def make_params(key, in_channels, out_channels):
    # Conv weights stored as (Cout, Cin) = PyTorch 1x1 conv weight squeezed.
    # Conv biases are kept (and used by the reference) to exercise the
    # bias-cancellation path; BN affines are non-trivial.
    ks = jax.random.split(key, 12)
    C = out_channels
    return {
        "w1": 0.1 * jax.random.normal(ks[0], (C, in_channels), jnp.float32),
        "b1": 0.1 * jax.random.normal(ks[1], (C,), jnp.float32),
        "g1": 1.0 + 0.1 * jax.random.normal(ks[2], (C,), jnp.float32),
        "be1": 0.1 * jax.random.normal(ks[3], (C,), jnp.float32),
        "w2": 0.1 * jax.random.normal(ks[4], (C, C), jnp.float32),
        "b2": 0.1 * jax.random.normal(ks[5], (C,), jnp.float32),
        "g2": 1.0 + 0.1 * jax.random.normal(ks[6], (C,), jnp.float32),
        "be2": 0.1 * jax.random.normal(ks[7], (C,), jnp.float32),
        "w3": 0.1 * jax.random.normal(ks[8], (C, C), jnp.float32),
        "b3": 0.1 * jax.random.normal(ks[9], (C,), jnp.float32),
        "g3": 1.0 + 0.1 * jax.random.normal(ks[10], (C,), jnp.float32),
        "be3": 0.1 * jax.random.normal(ks[11], (C,), jnp.float32),
    }


if __name__ == "__main__":
    N, Cin, Cout, H, W = 2, 4, 8, 16, 16

    key = jax.random.PRNGKey(0)
    kx, kp = jax.random.split(key, 2)
    x = jax.random.normal(kx, (N, Cin, H, W), jnp.float32)
    params = make_params(kp, Cin, Cout)

    out = fusion_ssd_forward(x, params)
    out = jax.block_until_ready(out)

    ref = reference_forward(x, params)
    np.testing.assert_allclose(np.asarray(out), np.asarray(ref),
                               rtol=1e-4, atol=1e-4)
    assert out.shape == (N, Cout, H, W)
    print("KERNEL_OK")
</pallas_src>

<mosaic_0001>
module attributes {stable_mosaic.version = 11 : i64} {
  func.func @fusion_kernel(%arg0: i32, %arg1: memref<2x4x256xf32, #tpu.memory_space<vmem>>, %arg2: memref<8x26xf32, #tpu.memory_space<vmem>>, %arg3: memref<2x8x256xf32, #tpu.memory_space<vmem>>) attributes {dimension_semantics = [#tpu.dimension_semantics<arbitrary>], iteration_bounds = array<i64: 1>, scalar_prefetch = 0 : i64, scratch_operands = 0 : i64, tpu.core_type = #tpu.core_type<tc>, window_params = [{pipeline_mode = #tpu.pipeline_mode<synchronous>, transform_indices = @transform_0, window_bounds = array<i64: 2, 4, 256>}, {pipeline_mode = #tpu.pipeline_mode<synchronous>, transform_indices = @transform_1, window_bounds = array<i64: 8, 26>}, {pipeline_mode = #tpu.pipeline_mode<synchronous>, transform_indices = @transform_2, window_bounds = array<i64: 2, 8, 256>}]} {
    %c0 = arith.constant 0 : index
    %c0_0 = arith.constant 0 : index
    %0 = vector.load %arg2[%c0, %c0_0] : memref<8x26xf32, #tpu.memory_space<vmem>>, vector<8x26xf32>
    %1 = vector.extract_strided_slice %0 {offsets = [0, 0], sizes = [8, 4], strides = [1, 1]} : vector<8x26xf32> to vector<8x4xf32>
    %2 = vector.extract_strided_slice %0 {offsets = [0, 4], sizes = [8, 8], strides = [1, 1]} : vector<8x26xf32> to vector<8x8xf32>
    %3 = vector.extract_strided_slice %0 {offsets = [0, 12], sizes = [8, 8], strides = [1, 1]} : vector<8x26xf32> to vector<8x8xf32>
    %c0_1 = arith.constant 0 : index
    %c0_2 = arith.constant 0 : index
    %c0_3 = arith.constant 0 : index
    %4 = vector.load %arg1[%c0_1, %c0_2, %c0_3] : memref<2x4x256xf32, #tpu.memory_space<vmem>>, vector<1x4x256xf32>
    %5 = vector.shape_cast %4 : vector<1x4x256xf32> to vector<4x256xf32>
    %c1 = arith.constant 1 : index
    %c0_4 = arith.constant 0 : index
    %c0_5 = arith.constant 0 : index
    %6 = vector.load %arg1[%c1, %c0_4, %c0_5] : memref<2x4x256xf32, #tpu.memory_space<vmem>>, vector<1x4x256xf32>
    %7 = vector.shape_cast %6 : vector<1x4x256xf32> to vector<4x256xf32>
    %8 = tpu.concatenate %5, %7 in 1 : vector<4x256xf32>, vector<4x256xf32> -> vector<4x512xf32>
    %9 = vector.extract_strided_slice %0 {offsets = [0, 20], sizes = [8, 1], strides = [1, 1]} : vector<8x26xf32> to vector<8x1xf32>
    %10 = vector.extract_strided_slice %0 {offsets = [0, 21], sizes = [8, 1], strides = [1, 1]} : vector<8x26xf32> to vector<8x1xf32>
    %11 = vector.extract_strided_slice %1 {offsets = [0, 0], sizes = [8, 1], strides = [1, 1]} : vector<8x4xf32> to vector<8x1xf32>
    %12 = vector.extract_strided_slice %8 {offsets = [0, 0], sizes = [1, 512], strides = [1, 1]} : vector<4x512xf32> to vector<1x512xf32>
    %13 = vector.broadcast %11 : vector<8x1xf32> to vector<8x512xf32>
    %14 = vector.broadcast %12 : vector<1x512xf32> to vector<8x512xf32>
    %15 = arith.mulf %13, %14 : vector<8x512xf32>
    %16 = vector.extract_strided_slice %1 {offsets = [0, 1], sizes = [8, 1], strides = [1, 1]} : vector<8x4xf32> to vector<8x1xf32>
    %17 = vector.extract_strided_slice %8 {offsets = [1, 0], sizes = [1, 512], strides = [1, 1]} : vector<4x512xf32> to vector<1x512xf32>
    %18 = vector.broadcast %16 : vector<8x1xf32> to vector<8x512xf32>
    %19 = vector.broadcast %17 : vector<1x512xf32> to vector<8x512xf32>
    %20 = arith.mulf %18, %19 : vector<8x512xf32>
    %21 = arith.addf %15, %20 : vector<8x512xf32>
    %22 = vector.extract_strided_slice %1 {offsets = [0, 2], sizes = [8, 1], strides = [1, 1]} : vector<8x4xf32> to vector<8x1xf32>
    %23 = vector.extract_strided_slice %8 {offsets = [2, 0], sizes = [1, 512], strides = [1, 1]} : vector<4x512xf32> to vector<1x512xf32>
    %24 = vector.broadcast %22 : vector<8x1xf32> to vector<8x512xf32>
    %25 = vector.broadcast %23 : vector<1x512xf32> to vector<8x512xf32>
    %26 = arith.mulf %24, %25 : vector<8x512xf32>
    %27 = arith.addf %21, %26 : vector<8x512xf32>
    %28 = vector.extract_strided_slice %1 {offsets = [0, 3], sizes = [8, 1], strides = [1, 1]} : vector<8x4xf32> to vector<8x1xf32>
    %29 = vector.extract_strided_slice %8 {offsets = [3, 0], sizes = [1, 512], strides = [1, 1]} : vector<4x512xf32> to vector<1x512xf32>
    %30 = vector.broadcast %28 : vector<8x1xf32> to vector<8x512xf32>
    %31 = vector.broadcast %29 : vector<1x512xf32> to vector<8x512xf32>
    %32 = arith.mulf %30, %31 : vector<8x512xf32>
    %33 = arith.addf %27, %32 : vector<8x512xf32>
    %cst = arith.constant dense<0.000000e+00> : vector<8xf32>
    %34 = vector.multi_reduction <add>, %33, %cst [1] : vector<8x512xf32> to vector<8xf32>
    %35 = vector.shape_cast %34 : vector<8xf32> to vector<8x1xf32>
    %36 = arith.mulf %33, %33 : vector<8x512xf32>
    %cst_6 = arith.constant dense<0.000000e+00> : vector<8xf32>
    %37 = vector.multi_reduction <add>, %36, %cst_6 [1] : vector<8x512xf32> to vector<8xf32>
    %38 = vector.shape_cast %37 : vector<8xf32> to vector<8x1xf32>
    %cst_7 = arith.constant 0.001953125 : f32
    %39 = vector.broadcast %cst_7 : f32 to vector<8x1xf32>
    %40 = arith.mulf %35, %39 : vector<8x1xf32>
    %cst_8 = arith.constant 0.001953125 : f32
    %41 = vector.broadcast %cst_8 : f32 to vector<8x1xf32>
    %42 = arith.mulf %38, %41 : vector<8x1xf32>
    %43 = arith.mulf %40, %40 : vector<8x1xf32>
    %44 = arith.subf %42, %43 : vector<8x1xf32>
    %cst_9 = arith.constant 0.000000e+00 : f32
    %45 = vector.broadcast %cst_9 : f32 to vector<8x1xf32>
    %46 = arith.maximumf %44, %45 : vector<8x1xf32>
    %cst_10 = arith.constant 9.99999974E-6 : f32
    %47 = vector.broadcast %cst_10 : f32 to vector<8x1xf32>
    %48 = arith.addf %46, %47 : vector<8x1xf32>
    %49 = math.rsqrt %48 : vector<8x1xf32>
    %50 = arith.mulf %9, %49 : vector<8x1xf32>
    %51 = arith.mulf %40, %50 : vector<8x1xf32>
    %52 = arith.subf %10, %51 : vector<8x1xf32>
    %53 = vector.broadcast %50 : vector<8x1xf32> to vector<8x512xf32>
    %54 = arith.mulf %33, %53 : vector<8x512xf32>
    %55 = vector.broadcast %52 : vector<8x1xf32> to vector<8x512xf32>
    %56 = arith.addf %54, %55 : vector<8x512xf32>
    %cst_11 = arith.constant 0.000000e+00 : f32
    %57 = vector.broadcast %cst_11 : f32 to vector<8x512xf32>
    %58 = arith.maximumf %56, %57 : vector<8x512xf32>
    %59 = vector.extract_strided_slice %0 {offsets = [0, 22], sizes = [8, 1], strides = [1, 1]} : vector<8x26xf32> to vector<8x1xf32>
    %60 = vector.extract_strided_slice %0 {offsets = [0, 23], sizes = [8, 1], strides = [1, 1]} : vector<8x26xf32> to vector<8x1xf32>
    %61 = vector.extract_strided_slice %2 {offsets = [0, 0], sizes = [8, 1], strides = [1, 1]} : vector<8x8xf32> to vector<8x1xf32>
    %62 = vector.extract_strided_slice %58 {offsets = [0, 0], sizes = [1, 512], strides = [1, 1]} : vector<8x512xf32> to vector<1x512xf32>
    %63 = vector.broadcast %61 : vector<8x1xf32> to vector<8x512xf32>
    %64 = vector.broadcast %62 : vector<1x512xf32> to vector<8x512xf32>
    %65 = arith.mulf %63, %64 : vector<8x512xf32>
    %66 = vector.extract_strided_slice %2 {offsets = [0, 1], sizes = [8, 1], strides = [1, 1]} : vector<8x8xf32> to vector<8x1xf32>
    %67 = vector.extract_strided_slice %58 {offsets = [1, 0], sizes = [1, 512], strides = [1, 1]} : vector<8x512xf32> to vector<1x512xf32>
    %68 = vector.broadcast %66 : vector<8x1xf32> to vector<8x512xf32>
    %69 = vector.broadcast %67 : vector<1x512xf32> to vector<8x512xf32>
    %70 = arith.mulf %68, %69 : vector<8x512xf32>
    %71 = arith.addf %65, %70 : vector<8x512xf32>
    %72 = vector.extract_strided_slice %2 {offsets = [0, 2], sizes = [8, 1], strides = [1, 1]} : vector<8x8xf32> to vector<8x1xf32>
    %73 = vector.extract_strided_slice %58 {offsets = [2, 0], sizes = [1, 512], strides = [1, 1]} : vector<8x512xf32> to vector<1x512xf32>
    %74 = vector.broadcast %72 : vector<8x1xf32> to vector<8x512xf32>
    %75 = vector.broadcast %73 : vector<1x512xf32> to vector<8x512xf32>
    %76 = arith.mulf %74, %75 : vector<8x512xf32>
    %77 = arith.addf %71, %76 : vector<8x512xf32>
    %78 = vector.extract_strided_slice %2 {offsets = [0, 3], sizes = [8, 1], strides = [1, 1]} : vector<8x8xf32> to vector<8x1xf32>
    %79 = vector.extract_strided_slice %58 {offsets = [3, 0], sizes = [1, 512], strides = [1, 1]} : vector<8x512xf32> to vector<1x512xf32>
    %80 = vector.broadcast %78 : vector<8x1xf32> to vector<8x512xf32>
    %81 = vector.broadcast %79 : vector<1x512xf32> to vector<8x512xf32>
    %82 = arith.mulf %80, %81 : vector<8x512xf32>
    %83 = arith.addf %77, %82 : vector<8x512xf32>
    %84 = vector.extract_strided_slice %2 {offsets = [0, 4], sizes = [8, 1], strides = [1, 1]} : vector<8x8xf32> to vector<8x1xf32>
    %85 = vector.extract_strided_slice %58 {offsets = [4, 0], sizes = [1, 512], strides = [1, 1]} : vector<8x512xf32> to vector<1x512xf32>
    %86 = vector.broadcast %84 : vector<8x1xf32> to vector<8x512xf32>
    %87 = vector.broadcast %85 : vector<1x512xf32> to vector<8x512xf32>
    %88 = arith.mulf %86, %87 : vector<8x512xf32>
    %89 = arith.addf %83, %88 : vector<8x512xf32>
    %90 = vector.extract_strided_slice %2 {offsets = [0, 5], sizes = [8, 1], strides = [1, 1]} : vector<8x8xf32> to vector<8x1xf32>
    %91 = vector.extract_strided_slice %58 {offsets = [5, 0], sizes = [1, 512], strides = [1, 1]} : vector<8x512xf32> to vector<1x512xf32>
    %92 = vector.broadcast %90 : vector<8x1xf32> to vector<8x512xf32>
    %93 = vector.broadcast %91 : vector<1x512xf32> to vector<8x512xf32>
    %94 = arith.mulf %92, %93 : vector<8x512xf32>
    %95 = arith.addf %89, %94 : vector<8x512xf32>
    %96 = vector.extract_strided_slice %2 {offsets = [0, 6], sizes = [8, 1], strides = [1, 1]} : vector<8x8xf32> to vector<8x1xf32>
    %97 = vector.extract_strided_slice %58 {offsets = [6, 0], sizes = [1, 512], strides = [1, 1]} : vector<8x512xf32> to vector<1x512xf32>
    %98 = vector.broadcast %96 : vector<8x1xf32> to vector<8x512xf32>
    %99 = vector.broadcast %97 : vector<1x512xf32> to vector<8x512xf32>
    %100 = arith.mulf %98, %99 : vector<8x512xf32>
    %101 = arith.addf %95, %100 : vector<8x512xf32>
    %102 = vector.extract_strided_slice %2 {offsets = [0, 7], sizes = [8, 1], strides = [1, 1]} : vector<8x8xf32> to vector<8x1xf32>
    %103 = vector.extract_strided_slice %58 {offsets = [7, 0], sizes = [1, 512], strides = [1, 1]} : vector<8x512xf32> to vector<1x512xf32>
    %104 = vector.broadcast %102 : vector<8x1xf32> to vector<8x512xf32>
    %105 = vector.broadcast %103 : vector<1x512xf32> to vector<8x512xf32>
    %106 = arith.mulf %104, %105 : vector<8x512xf32>
    %107 = arith.addf %101, %106 : vector<8x512xf32>
    %cst_12 = arith.constant dense<0.000000e+00> : vector<8xf32>
    %108 = vector.multi_reduction <add>, %107, %cst_12 [1] : vector<8x512xf32> to vector<8xf32>
    %109 = vector.shape_cast %108 : vector<8xf32> to vector<8x1xf32>
    %110 = arith.mulf %107, %107 : vector<8x512xf32>
    %cst_13 = arith.constant dense<0.000000e+00> : vector<8xf32>
    %111 = vector.multi_reduction <add>, %110, %cst_13 [1] : vector<8x512xf32> to vector<8xf32>
    %112 = vector.shape_cast %111 : vector<8xf32> to vector<8x1xf32>
    %cst_14 = arith.constant 0.001953125 : f32
    %113 = vector.broadcast %cst_14 : f32 to vector<8x1xf32>
    %114 = arith.mulf %109, %113 : vector<8x1xf32>
    %cst_15 = arith.constant 0.001953125 : f32
    %115 = vector.broadcast %cst_15 : f32 to vector<8x1xf32>
    %116 = arith.mulf %112, %115 : vector<8x1xf32>
    %117 = arith.mulf %114, %114 : vector<8x1xf32>
    %118 = arith.subf %116, %117 : vector<8x1xf32>
    %cst_16 = arith.constant 0.000000e+00 : f32
    %119 = vector.broadcast %cst_16 : f32 to vector<8x1xf32>
    %120 = arith.maximumf %118, %119 : vector<8x1xf32>
    %cst_17 = arith.constant 9.99999974E-6 : f32
    %121 = vector.broadcast %cst_17 : f32 to vector<8x1xf32>
    %122 = arith.addf %120, %121 : vector<8x1xf32>
    %123 = math.rsqrt %122 : vector<8x1xf32>
    %124 = arith.mulf %59, %123 : vector<8x1xf32>
    %125 = arith.mulf %114, %124 : vector<8x1xf32>
    %126 = arith.subf %60, %125 : vector<8x1xf32>
    %127 = vector.broadcast %124 : vector<8x1xf32> to vector<8x512xf32>
    %128 = arith.mulf %107, %127 : vector<8x512xf32>
    %129 = vector.broadcast %126 : vector<8x1xf32> to vector<8x512xf32>
    %130 = arith.addf %128, %129 : vector<8x512xf32>
    %cst_18 = arith.constant 0.000000e+00 : f32
    %131 = vector.broadcast %cst_18 : f32 to vector<8x512xf32>
    %132 = arith.maximumf %130, %131 : vector<8x512xf32>
    %133 = vector.extract_strided_slice %0 {offsets = [0, 24], sizes = [8, 1], strides = [1, 1]} : vector<8x26xf32> to vector<8x1xf32>
    %134 = vector.extract_strided_slice %0 {offsets = [0, 25], sizes = [8, 1], strides = [1, 1]} : vector<8x26xf32> to vector<8x1xf32>
    %135 = vector.extract_strided_slice %3 {offsets = [0, 0], sizes = [8, 1], strides = [1, 1]} : vector<8x8xf32> to vector<8x1xf32>
    %136 = vector.extract_strided_slice %132 {offsets = [0, 0], sizes = [1, 512], strides = [1, 1]} : vector<8x512xf32> to vector<1x512xf32>
    %137 = vector.broadcast %135 : vector<8x1xf32> to vector<8x512xf32>
    %138 = vector.broadcast %136 : vector<1x512xf32> to vector<8x512xf32>
    %139 = arith.mulf %137, %138 : vector<8x512xf32>
    %140 = vector.extract_strided_slice %3 {offsets = [0, 1], sizes = [8, 1], strides = [1, 1]} : vector<8x8xf32> to vector<8x1xf32>
    %141 = vector.extract_strided_slice %132 {offsets = [1, 0], sizes = [1, 512], strides = [1, 1]} : vector<8x512xf32> to vector<1x512xf32>
    %142 = vector.broadcast %140 : vector<8x1xf32> to vector<8x512xf32>
    %143 = vector.broadcast %141 : vector<1x512xf32> to vector<8x512xf32>
    %144 = arith.mulf %142, %143 : vector<8x512xf32>
    %145 = arith.addf %139, %144 : vector<8x512xf32>
    %146 = vector.extract_strided_slice %3 {offsets = [0, 2], sizes = [8, 1], strides = [1, 1]} : vector<8x8xf32> to vector<8x1xf32>
    %147 = vector.extract_strided_slice %132 {offsets = [2, 0], sizes = [1, 512], strides = [1, 1]} : vector<8x512xf32> to vector<1x512xf32>
    %148 = vector.broadcast %146 : vector<8x1xf32> to vector<8x512xf32>
    %149 = vector.broadcast %147 : vector<1x512xf32> to vector<8x512xf32>
    %150 = arith.mulf %148, %149 : vector<8x512xf32>
    %151 = arith.addf %145, %150 : vector<8x512xf32>
    %152 = vector.extract_strided_slice %3 {offsets = [0, 3], sizes = [8, 1], strides = [1, 1]} : vector<8x8xf32> to vector<8x1xf32>
    %153 = vector.extract_strided_slice %132 {offsets = [3, 0], sizes = [1, 512], strides = [1, 1]} : vector<8x512xf32> to vector<1x512xf32>
    %154 = vector.broadcast %152 : vector<8x1xf32> to vector<8x512xf32>
    %155 = vector.broadcast %153 : vector<1x512xf32> to vector<8x512xf32>
    %156 = arith.mulf %154, %155 : vector<8x512xf32>
    %157 = arith.addf %151, %156 : vector<8x512xf32>
    %158 = vector.extract_strided_slice %3 {offsets = [0, 4], sizes = [8, 1], strides = [1, 1]} : vector<8x8xf32> to vector<8x1xf32>
    %159 = vector.extract_strided_slice %132 {offsets = [4, 0], sizes = [1, 512], strides = [1, 1]} : vector<8x512xf32> to vector<1x512xf32>
    %160 = vector.broadcast %158 : vector<8x1xf32> to vector<8x512xf32>
    %161 = vector.broadcast %159 : vector<1x512xf32> to vector<8x512xf32>
    %162 = arith.mulf %160, %161 : vector<8x512xf32>
    %163 = arith.addf %157, %162 : vector<8x512xf32>
    %164 = vector.extract_strided_slice %3 {offsets = [0, 5], sizes = [8, 1], strides = [1, 1]} : vector<8x8xf32> to vector<8x1xf32>
    %165 = vector.extract_strided_slice %132 {offsets = [5, 0], sizes = [1, 512], strides = [1, 1]} : vector<8x512xf32> to vector<1x512xf32>
    %166 = vector.broadcast %164 : vector<8x1xf32> to vector<8x512xf32>
    %167 = vector.broadcast %165 : vector<1x512xf32> to vector<8x512xf32>
    %168 = arith.mulf %166, %167 : vector<8x512xf32>
    %169 = arith.addf %163, %168 : vector<8x512xf32>
    %170 = vector.extract_strided_slice %3 {offsets = [0, 6], sizes = [8, 1], strides = [1, 1]} : vector<8x8xf32> to vector<8x1xf32>
    %171 = vector.extract_strided_slice %132 {offsets = [6, 0], sizes = [1, 512], strides = [1, 1]} : vector<8x512xf32> to vector<1x512xf32>
    %172 = vector.broadcast %170 : vector<8x1xf32> to vector<8x512xf32>
    %173 = vector.broadcast %171 : vector<1x512xf32> to vector<8x512xf32>
    %174 = arith.mulf %172, %173 : vector<8x512xf32>
    %175 = arith.addf %169, %174 : vector<8x512xf32>
    %176 = vector.extract_strided_slice %3 {offsets = [0, 7], sizes = [8, 1], strides = [1, 1]} : vector<8x8xf32> to vector<8x1xf32>
    %177 = vector.extract_strided_slice %132 {offsets = [7, 0], sizes = [1, 512], strides = [1, 1]} : vector<8x512xf32> to vector<1x512xf32>
    %178 = vector.broadcast %176 : vector<8x1xf32> to vector<8x512xf32>
    %179 = vector.broadcast %177 : vector<1x512xf32> to vector<8x512xf32>
    %180 = arith.mulf %178, %179 : vector<8x512xf32>
    %181 = arith.addf %175, %180 : vector<8x512xf32>
    %cst_19 = arith.constant dense<0.000000e+00> : vector<8xf32>
    %182 = vector.multi_reduction <add>, %181, %cst_19 [1] : vector<8x512xf32> to vector<8xf32>
    %183 = vector.shape_cast %182 : vector<8xf32> to vector<8x1xf32>
    %184 = arith.mulf %181, %181 : vector<8x512xf32>
    %cst_20 = arith.constant dense<0.000000e+00> : vector<8xf32>
    %185 = vector.multi_reduction <add>, %184, %cst_20 [1] : vector<8x512xf32> to vector<8xf32>
    %186 = vector.shape_cast %185 : vector<8xf32> to vector<8x1xf32>
    %cst_21 = arith.constant 0.001953125 : f32
    %187 = vector.broadcast %cst_21 : f32 to vector<8x1xf32>
    %188 = arith.mulf %183, %187 : vector<8x1xf32>
    %cst_22 = arith.constant 0.001953125 : f32
    %189 = vector.broadcast %cst_22 : f32 to vector<8x1xf32>
    %190 = arith.mulf %186, %189 : vector<8x1xf32>
    %191 = arith.mulf %188, %188 : vector<8x1xf32>
    %192 = arith.subf %190, %191 : vector<8x1xf32>
    %cst_23 = arith.constant 0.000000e+00 : f32
    %193 = vector.broadcast %cst_23 : f32 to vector<8x1xf32>
    %194 = arith.maximumf %192, %193 : vector<8x1xf32>
    %cst_24 = arith.constant 9.99999974E-6 : f32
    %195 = vector.broadcast %cst_24 : f32 to vector<8x1xf32>
    %196 = arith.addf %194, %195 : vector<8x1xf32>
    %197 = math.rsqrt %196 : vector<8x1xf32>
    %198 = arith.mulf %133, %197 : vector<8x1xf32>
    %199 = arith.mulf %188, %198 : vector<8x1xf32>
    %200 = arith.subf %134, %199 : vector<8x1xf32>
    %201 = vector.broadcast %198 : vector<8x1xf32> to vector<8x512xf32>
    %202 = arith.mulf %181, %201 : vector<8x512xf32>
    %203 = vector.broadcast %200 : vector<8x1xf32> to vector<8x512xf32>
    %204 = arith.addf %202, %203 : vector<8x512xf32>
    %cst_25 = arith.constant 0.000000e+00 : f32
    %205 = vector.broadcast %cst_25 : f32 to vector<8x512xf32>
    %206 = arith.maximumf %204, %205 : vector<8x512xf32>
    %207 = vector.extract_strided_slice %206 {offsets = [0, 0], sizes = [8, 256], strides = [1, 1]} : vector<8x512xf32> to vector<8x256xf32>
    %c0_26 = arith.constant 0 : index
    %c0_27 = arith.constant 0 : index
    %c0_28 = arith.constant 0 : index
    %208 = vector.load %arg3[%c0_26, %c0_27, %c0_28] : memref<2x8x256xf32, #tpu.memory_space<vmem>>, vector<1x8x256xf32>
    %209 = vector.shape_cast %208 : vector<1x8x256xf32> to vector<8x256xf32>
    %210 = vector.shape_cast %207 : vector<8x256xf32> to vector<1x8x256xf32>
    tpu.vector_store %arg3[%c0_26, %c0_27, %c0_28], %210 {strides = array<i32>} : memref<2x8x256xf32, #tpu.memory_space<vmem>>, vector<1x8x256xf32>,
    %211 = vector.extract_strided_slice %206 {offsets = [0, 256], sizes = [8, 256], strides = [1, 1]} : vector<8x512xf32> to vector<8x256xf32>
    %c1_29 = arith.constant 1 : index
    %c0_30 = arith.constant 0 : index
    %c0_31 = arith.constant 0 : index
    %212 = vector.load %arg3[%c1_29, %c0_30, %c0_31] : memref<2x8x256xf32, #tpu.memory_space<vmem>>, vector<1x8x256xf32>
    %213 = vector.shape_cast %212 : vector<1x8x256xf32> to vector<8x256xf32>
    %214 = vector.shape_cast %211 : vector<8x256xf32> to vector<1x8x256xf32>
    tpu.vector_store %arg3[%c1_29, %c0_30, %c0_31], %214 {strides = array<i32>} : memref<2x8x256xf32, #tpu.memory_space<vmem>>, vector<1x8x256xf32>,
    return
  }
  func.func @transform_0(%arg0: i32) -> (i32, i32, i32) {
    %c0_i32 = arith.constant 0 : i32
    %c0_i32_0 = arith.constant 0 : i32
    %c0_i32_1 = arith.constant 0 : i32
    %c0_i32_2 = arith.constant 0 : i32
    return %c0_i32, %c0_i32_0, %c0_i32_1 : i32, i32, i32
  }
  func.func @transform_1(%arg0: i32) -> (i32, i32) {
    %c0_i32 = arith.constant 0 : i32
    %c0_i32_0 = arith.constant 0 : i32
    %c0_i32_1 = arith.constant 0 : i32
    return %c0_i32, %c0_i32_0 : i32, i32
  }
  func.func @transform_2(%arg0: i32) -> (i32, i32, i32) {
    %c0_i32 = arith.constant 0 : i32
    %c0_i32_0 = arith.constant 0 : i32
    %c0_i32_1 = arith.constant 0 : i32
    %c0_i32_2 = arith.constant 0 : i32
    return %c0_i32, %c0_i32_0, %c0_i32_1 : i32, i32, i32
  }
}

</mosaic_0001>

<llo_original>
// kernel: tpu_custom_call.1
$region0: #{tpu_custom_call.1}
  #allocation0 [shape = 'u32[]', space=smem, size = 0x4, offset = 0x4, fixed_abs, tag = 'smem constant byte address 0x4 - core index']
  #allocation1 [shape = 'u32[144,128]{1,0:T(1,128)}', space=vmem, size = 0x12000, scoped, tag = 'internal scratch']
  %s0 = inlined_call_operand.hbm [shape: f32[2,4,256], index: 0, kind: input, shape index: {}]
  %s1 = inlined_call_operand.hbm [shape: f32[8,26], index: 1, kind: input, shape index: {}]
  %s2 = inlined_call_operand.hbm [shape: f32[2,8,256], index: 2, kind: output, shape index: {}]
  %s3 = sld [smem:[#allocation0]]
  $region26: #{tpu_custom_call.1} parent=0
    _
  %s5 = ssub.s32 1, %s3
  %s6 = scalar_select 0, %s5, %s3
  $region1: #{tpu_custom_call.1} parent=0
    #allocation2 [shape = 'u8[8192]{0}', space=vmem, size = 0x2000, scoped, tag = 'input window, operand 0, single buffered']
    #allocation3 [shape = 's32[1]{0}', space=sflag, size = 0x4, scoped, tag = 'scoped memory for tpu_custom_call.1']
    #allocation4 [shape = 's32[1]{0}', space=sflag, size = 0x4, scoped, tag = 'scoped memory for tpu_custom_call.1']
    #allocation5 [shape = 'u8[4096]{0}', space=vmem, size = 0x1000, scoped, tag = 'input window, operand 1, single buffered']
    #allocation6 [shape = 's32[1]{0}', space=sflag, size = 0x4, scoped, tag = 'scoped memory for tpu_custom_call.1']
    #allocation7 [shape = 'u8[16384]{0}', space=vmem, size = 0x4000, scoped, tag = 'output window, operand 0, single buffered']
    %7 = vsyncpa [#allocation3], 0
    %8 = vsyncpa [#allocation6], 0
    %9 = vsyncpa [#allocation4], 0
    // Predicated region
    $region2: #{tpu_custom_call.1} parent=1 // pred_check
      _
    $region3: #{tpu_custom_call.1} parent=1 // pred_check_branch
      %11 = sbr.rel (0) target = $region5
    $region4: #{tpu_custom_call.1} parent=1 // pred_region
      %s13 = ssub.s32 256, 256
      %14 = vsyncadd [#allocation3], %s13
      %s15 = sshll.u32 [#allocation2], 4
      %s16 = int_to_ptr.vmem [resolvable:$true] %s15
      %21 = dma.hbm_to_vmem [thread:$0]  %s0, 256, %s16, [#allocation3], 128, 128, 8
    $region5: #{tpu_custom_call.1} parent=1 // pred_fallthru
      _
    // Predicated region
    $region6: #{tpu_custom_call.1} parent=1 // pred_check
      _
    $region7: #{tpu_custom_call.1} parent=1 // pred_check_branch
      %23 = sbr.rel (0) target = $region9
    $region8: #{tpu_custom_call.1} parent=1 // pred_region
      %s25 = ssub.s32 128, 128
      %26 = vsyncadd [#allocation6], %s25
      %s28 = sshll.u32 [#allocation5], 4
      %s29 = int_to_ptr.vmem [resolvable:$true] %s28
      %31 = dma.hbm_to_vmem [thread:$0]  %s1, 128, %s29, [#allocation6]
    $region9: #{tpu_custom_call.1} parent=1 // pred_fallthru
      _
    // Predicated region
    $region10: #{tpu_custom_call.1} parent=1 // pred_check
      _
    $region11: #{tpu_custom_call.1} parent=1 // pred_check_branch
      %33 = sbr.rel (0) target = $region13
    $region12: #{tpu_custom_call.1} parent=1 // pred_region
      %34 = dma.done [#allocation3], 256
    $region13: #{tpu_custom_call.1} parent=1 // pred_fallthru
      _
    // Predicated region
    $region14: #{tpu_custom_call.1} parent=1 // pred_check
      _
    $region15: #{tpu_custom_call.1} parent=1 // pred_check_branch
      %36 = sbr.rel (0) target = $region17
    $region16: #{tpu_custom_call.1} parent=1 // pred_region
      %37 = dma.done [#allocation6], 128
    $region17: #{tpu_custom_call.1} parent=1 // pred_fallthru
      _
    %v38 = vld [vmem:[#allocation5] sm:$0xff]
    %v39 = vld [vmem:[#allocation2] sm:$0xff]
    %s40 = scalar_lea.vmem [#allocation2], 8
    %v41 = vld [vmem:[%s40] sm:$0xff]
    %v43 = vcombine.high %v39, %v39
    %v46 = vcombine.high %v41, %v41
    %49 = vset.pattern.permute.xlu0 0
    %50 = vperm.xlu0 %49, %v38
    %v51 = vpop.permute.xlu0 %50
    %v53 = vlaneseq
    %v54 = vshrl.u32 %v53, 7
    %v55 = vsub.s32 0, %v54
    %v56 = vrot.slane %v39, %v55
    %v57 = vlaneseq
    %v58 = vshrl.u32 %v57, 7
    %v59 = vsub.s32 0, %v58
    %v60 = vrot.slane %v43, %v59
    %v61 = vlaneseq
    %v62 = vshrl.u32 %v61, 7
    %v63 = vsub.s32 0, %v62
    %v64 = vrot.slane %v41, %v63
    %v65 = vlaneseq
    %v66 = vshrl.u32 %v65, 7
    %v67 = vsub.s32 0, %v66
    %v68 = vrot.slane %v46, %v67
    %v69 = vmul.f32 %v51, %v56
    %v70 = vmul.f32 %v51, %v60
    %v71 = vmul.f32 %v51, %v64
    %v72 = vmul.f32 %v51, %v68
    %73 = vset.pattern.permute.xlu0 1
    %74 = vperm.xlu0 %73, %v38
    %v75 = vpop.permute.xlu0 %74
    %v77 = vlaneseq
    %v78 = vshrl.u32 %v77, 7
    %v79 = vsub.s32 1, %v78
    %v80 = vrot.slane %v39, %v79
    %v81 = vlaneseq
    %v82 = vshrl.u32 %v81, 7
    %v83 = vsub.s32 1, %v82
    %v84 = vrot.slane %v43, %v83
    %v85 = vlaneseq
    %v86 = vshrl.u32 %v85, 7
    %v87 = vsub.s32 1, %v86
    %v88 = vrot.slane %v41, %v87
    %v89 = vlaneseq
    %v90 = vshrl.u32 %v89, 7
    %v91 = vsub.s32 1, %v90
    %v92 = vrot.slane %v46, %v91
    %v93 = vmul.f32 %v75, %v80
    %v94 = vmul.f32 %v75, %v84
    %v95 = vmul.f32 %v75, %v88
    %v96 = vmul.f32 %v75, %v92
    %v97 = vadd.f32 %v69, %v93
    %v98 = vadd.f32 %v70, %v94
    %v99 = vadd.f32 %v71, %v95
    %v100 = vadd.f32 %v72, %v96
    %101 = vset.pattern.permute.xlu0 2
    %102 = vperm.xlu0 %101, %v38
    %v103 = vpop.permute.xlu0 %102
    %v105 = vlaneseq
    %v106 = vshrl.u32 %v105, 7
    %v107 = vsub.s32 2, %v106
    %v108 = vrot.slane %v39, %v107
    %v109 = vlaneseq
    %v110 = vshrl.u32 %v109, 7
    %v111 = vsub.s32 2, %v110
    %v112 = vrot.slane %v43, %v111
    %v113 = vlaneseq
    %v114 = vshrl.u32 %v113, 7
    %v115 = vsub.s32 2, %v114
    %v116 = vrot.slane %v41, %v115
    %v117 = vlaneseq
    %v118 = vshrl.u32 %v117, 7
    %v119 = vsub.s32 2, %v118
    %v120 = vrot.slane %v46, %v119
    %v121 = vmul.f32 %v103, %v108
    %v122 = vmul.f32 %v103, %v112
    %v123 = vmul.f32 %v103, %v116
    %v124 = vmul.f32 %v103, %v120
    %v125 = vadd.f32 %v97, %v121
    %v126 = vadd.f32 %v98, %v122
    %v127 = vadd.f32 %v99, %v123
    %v128 = vadd.f32 %v100, %v124
    %129 = vset.pattern.permute.xlu0 3
    %130 = vperm.xlu0 %129, %v38
    %v131 = vpop.permute.xlu0 %130
    %v133 = vlaneseq
    %v134 = vshrl.u32 %v133, 7
    %v135 = vsub.s32 3, %v134
    %v136 = vrot.slane %v39, %v135
    %v137 = vlaneseq
    %v138 = vshrl.u32 %v137, 7
    %v139 = vsub.s32 3, %v138
    %v140 = vrot.slane %v43, %v139
    %v141 = vlaneseq
    %v142 = vshrl.u32 %v141, 7
    %v143 = vsub.s32 3, %v142
    %v144 = vrot.slane %v41, %v143
    %v145 = vlaneseq
    %v146 = vshrl.u32 %v145, 7
    %v147 = vsub.s32 3, %v146
    %v148 = vrot.slane %v46, %v147
    %v149 = vmul.f32 %v131, %v136
    %v150 = vmul.f32 %v131, %v140
    %v151 = vmul.f32 %v131, %v144
    %v152 = vmul.f32 %v131, %v148
    %v153 = vadd.f32 %v125, %v149
    %v154 = vadd.f32 %v126, %v150
    %v155 = vadd.f32 %v127, %v151
    %v156 = vadd.f32 %v128, %v152
    %v157 = vadd.f32 %v153, %v154
    %v158 = vadd.f32 %v157, %v155
    %v159 = vadd.f32 %v158, %v156
    %160 = vadd.xlane.f32.xlu0 %v159
    %v161 = vpop.xlane.xlu0 %160
    %v162 = vmul.f32 %v153, %v153
    %v163 = vmul.f32 %v154, %v154
    %v164 = vmul.f32 %v155, %v155
    %v165 = vmul.f32 %v156, %v156
    %v166 = vadd.f32 %v162, %v163
    %v167 = vadd.f32 %v166, %v164
    %v168 = vadd.f32 %v167, %v165
    %169 = vadd.xlane.f32.xlu0 %v168
    %v170 = vpop.xlane.xlu0 %169
    %v171 = vmul.f32 %v161, 0.001953125
    %v172 = vmul.f32 %v170, 0.001953125
    %v173 = vmul.f32 %v171, %v171
    %v174 = vsub.f32 %v172, %v173
    %v175 = vmax.f32 %v174, 0.0
    %v176 = vadd.f32 %v175, 1e-05
    %v177 = vrsqrt.pop %v176
    %v178 = vmul.f32 %v38, %v177
    %v179 = vmul.f32 %v171, %v178
    %181 = vrot.lane.b32.xlu0 %v179, 1
    %v182 = vpop.permute.xlu0 %181
    %v184 = vsub.f32 %v38, %v182
    %186 = vset.pattern.permute.xlu0 20
    %187 = vperm.xlu0 %186, %v178
    %v188 = vpop.permute.xlu0 %187
    %v190 = vmul.f32 %v153, %v188
    %v191 = vmul.f32 %v154, %v188
    %v192 = vmul.f32 %v155, %v188
    %v193 = vmul.f32 %v156, %v188
    %195 = vset.pattern.permute.xlu0 21
    %196 = vperm.xlu0 %195, %v184
    %v197 = vpop.permute.xlu0 %196
    %v199 = vadd.f32 %v190, %v197
    %v200 = vadd.f32 %v191, %v197
    %v201 = vadd.f32 %v192, %v197
    %v202 = vadd.f32 %v193, %v197
    %v203 = vmax.f32 %v199, 0.0
    %v204 = vmax.f32 %v200, 0.0
    %v205 = vmax.f32 %v201, 0.0
    %v206 = vmax.f32 %v202, 0.0
    %207 = vset.pattern.permute.xlu0 4
    %208 = vperm.xlu0 %207, %v38
    %v209 = vpop.permute.xlu0 %208
    %v211 = vlaneseq
    %v212 = vshrl.u32 %v211, 7
    %v213 = vsub.s32 0, %v212
    %v214 = vrot.slane %v203, %v213
    %v215 = vlaneseq
    %v216 = vshrl.u32 %v215, 7
    %v217 = vsub.s32 0, %v216
    %v218 = vrot.slane %v204, %v217
    %v219 = vlaneseq
    %v220 = vshrl.u32 %v219, 7
    %v221 = vsub.s32 0, %v220
    %v222 = vrot.slane %v205, %v221
    %v223 = vlaneseq
    %v224 = vshrl.u32 %v223, 7
    %v225 = vsub.s32 0, %v224
    %v226 = vrot.slane %v206, %v225
    %v227 = vmul.f32 %v209, %v214
    %v228 = vmul.f32 %v209, %v218
    %v229 = vmul.f32 %v209, %v222
    %v230 = vmul.f32 %v209, %v226
    %231 = vset.pattern.permute.xlu0 5
    %232 = vperm.xlu0 %231, %v38
    %v233 = vpop.permute.xlu0 %232
    %v235 = vlaneseq
    %v236 = vshrl.u32 %v235, 7
    %v237 = vsub.s32 1, %v236
    %v238 = vrot.slane %v203, %v237
    %v239 = vlaneseq
    %v240 = vshrl.u32 %v239, 7
    %v241 = vsub.s32 1, %v240
    %v242 = vrot.slane %v204, %v241
    %v243 = vlaneseq
    %v244 = vshrl.u32 %v243, 7
    %v245 = vsub.s32 1, %v244
    %v246 = vrot.slane %v205, %v245
    %v247 = vlaneseq
    %v248 = vshrl.u32 %v247, 7
    %v249 = vsub.s32 1, %v248
    %v250 = vrot.slane %v206, %v249
    %v251 = vmul.f32 %v233, %v238
    %v252 = vmul.f32 %v233, %v242
    %v253 = vmul.f32 %v233, %v246
    %v254 = vmul.f32 %v233, %v250
    %v255 = vadd.f32 %v227, %v251
    %v256 = vadd.f32 %v228, %v252
    %v257 = vadd.f32 %v229, %v253
    %v258 = vadd.f32 %v230, %v254
    %259 = vset.pattern.permute.xlu0 6
    %260 = vperm.xlu0 %259, %v38
    %v261 = vpop.permute.xlu0 %260
    %v263 = vlaneseq
    %v264 = vshrl.u32 %v263, 7
    %v265 = vsub.s32 2, %v264
    %v266 = vrot.slane %v203, %v265
    %v267 = vlaneseq
    %v268 = vshrl.u32 %v267, 7
    %v269 = vsub.s32 2, %v268
    %v270 = vrot.slane %v204, %v269
    %v271 = vlaneseq
    %v272 = vshrl.u32 %v271, 7
    %v273 = vsub.s32 2, %v272
    %v274 = vrot.slane %v205, %v273
    %v275 = vlaneseq
    %v276 = vshrl.u32 %v275, 7
    %v277 = vsub.s32 2, %v276
    %v278 = vrot.slane %v206, %v277
    %v279 = vmul.f32 %v261, %v266
    %v280 = vmul.f32 %v261, %v270
    %v281 = vmul.f32 %v261, %v274
    %v282 = vmul.f32 %v261, %v278
    %v283 = vadd.f32 %v255, %v279
    %v284 = vadd.f32 %v256, %v280
    %v285 = vadd.f32 %v257, %v281
    %v286 = vadd.f32 %v258, %v282
    %287 = vset.pattern.permute.xlu0 7
    %288 = vperm.xlu0 %287, %v38
    %v289 = vpop.permute.xlu0 %288
    %v291 = vlaneseq
    %v292 = vshrl.u32 %v291, 7
    %v293 = vsub.s32 3, %v292
    %v294 = vrot.slane %v203, %v293
    %v295 = vlaneseq
    %v296 = vshrl.u32 %v295, 7
    %v297 = vsub.s32 3, %v296
    %v298 = vrot.slane %v204, %v297
    %v299 = vlaneseq
    %v300 = vshrl.u32 %v299, 7
    %v301 = vsub.s32 3, %v300
    %v302 = vrot.slane %v205, %v301
    %v303 = vlaneseq
    %v304 = vshrl.u32 %v303, 7
    %v305 = vsub.s32 3, %v304
    %v306 = vrot.slane %v206, %v305
    %v307 = vmul.f32 %v289, %v294
    %v308 = vmul.f32 %v289, %v298
    %v309 = vmul.f32 %v289, %v302
    %v310 = vmul.f32 %v289, %v306
    %v311 = vadd.f32 %v283, %v307
    %v312 = vadd.f32 %v284, %v308
    %v313 = vadd.f32 %v285, %v309
    %v314 = vadd.f32 %v286, %v310
    %315 = vset.pattern.permute.xlu0 8
    %316 = vperm.xlu0 %315, %v38
    %v317 = vpop.permute.xlu0 %316
    %v319 = vlaneseq
    %v320 = vshrl.u32 %v319, 7
    %v321 = vsub.s32 4, %v320
    %v322 = vrot.slane %v203, %v321
    %v323 = vlaneseq
    %v324 = vshrl.u32 %v323, 7
    %v325 = vsub.s32 4, %v324
    %v326 = vrot.slane %v204, %v325
    %v327 = vlaneseq
    %v328 = vshrl.u32 %v327, 7
    %v329 = vsub.s32 4, %v328
    %v330 = vrot.slane %v205, %v329
    %v331 = vlaneseq
    %v332 = vshrl.u32 %v331, 7
    %v333 = vsub.s32 4, %v332
    %v334 = vrot.slane %v206, %v333
    %v335 = vmul.f32 %v317, %v322
    %v336 = vmul.f32 %v317, %v326
    %v337 = vmul.f32 %v317, %v330
    %v338 = vmul.f32 %v317, %v334
    %v339 = vadd.f32 %v311, %v335
    %v340 = vadd.f32 %v312, %v336
    %v341 = vadd.f32 %v313, %v337
    %v342 = vadd.f32 %v314, %v338
    %343 = vset.pattern.permute.xlu0 9
    %344 = vperm.xlu0 %343, %v38
    %v345 = vpop.permute.xlu0 %344
    %v347 = vlaneseq
    %v348 = vshrl.u32 %v347, 7
    %v349 = vsub.s32 5, %v348
    %v350 = vrot.slane %v203, %v349
    %v351 = vlaneseq
    %v352 = vshrl.u32 %v351, 7
    %v353 = vsub.s32 5, %v352
    %v354 = vrot.slane %v204, %v353
    %v355 = vlaneseq
    %v356 = vshrl.u32 %v355, 7
    %v357 = vsub.s32 5, %v356
    %v358 = vrot.slane %v205, %v357
    %v359 = vlaneseq
    %v360 = vshrl.u32 %v359, 7
    %v361 = vsub.s32 5, %v360
    %v362 = vrot.slane %v206, %v361
    %v363 = vmul.f32 %v345, %v350
    %v364 = vmul.f32 %v345, %v354
    %v365 = vmul.f32 %v345, %v358
    %v366 = vmul.f32 %v345, %v362
    %v367 = vadd.f32 %v339, %v363
    %v368 = vadd.f32 %v340, %v364
    %v369 = vadd.f32 %v341, %v365
    %v370 = vadd.f32 %v342, %v366
    %371 = vset.pattern.permute.xlu0 10
    %372 = vperm.xlu0 %371, %v38
    %v373 = vpop.permute.xlu0 %372
    %v375 = vlaneseq
    %v376 = vshrl.u32 %v375, 7
    %v377 = vsub.s32 6, %v376
    %v378 = vrot.slane %v203, %v377
    %v379 = vlaneseq
    %v380 = vshrl.u32 %v379, 7
    %v381 = vsub.s32 6, %v380
    %v382 = vrot.slane %v204, %v381
    %v383 = vlaneseq
    %v384 = vshrl.u32 %v383, 7
    %v385 = vsub.s32 6, %v384
    %v386 = vrot.slane %v205, %v385
    %v387 = vlaneseq
    %v388 = vshrl.u32 %v387, 7
    %v389 = vsub.s32 6, %v388
    %v390 = vrot.slane %v206, %v389
    %v391 = vmul.f32 %v373, %v378
    %v392 = vmul.f32 %v373, %v382
    %v393 = vmul.f32 %v373, %v386
    %v394 = vmul.f32 %v373, %v390
    %v395 = vadd.f32 %v367, %v391
    %v396 = vadd.f32 %v368, %v392
    %v397 = vadd.f32 %v369, %v393
    %v398 = vadd.f32 %v370, %v394
    %399 = vset.pattern.permute.xlu0 11
    %400 = vperm.xlu0 %399, %v38
    %v401 = vpop.permute.xlu0 %400
    %v403 = vlaneseq
    %v404 = vshrl.u32 %v403, 7
    %v405 = vsub.s32 7, %v404
    %v406 = vrot.slane %v203, %v405
    %v407 = vlaneseq
    %v408 = vshrl.u32 %v407, 7
    %v409 = vsub.s32 7, %v408
    %v410 = vrot.slane %v204, %v409
    %v411 = vlaneseq
    %v412 = vshrl.u32 %v411, 7
    %v413 = vsub.s32 7, %v412
    %v414 = vrot.slane %v205, %v413
    %v415 = vlaneseq
    %v416 = vshrl.u32 %v415, 7
    %v417 = vsub.s32 7, %v416
    %v418 = vrot.slane %v206, %v417
    %v419 = vmul.f32 %v401, %v406
    %v420 = vmul.f32 %v401, %v410
    %v421 = vmul.f32 %v401, %v414
    %v422 = vmul.f32 %v401, %v418
    %v423 = vadd.f32 %v395, %v419
    %v424 = vadd.f32 %v396, %v420
    %v425 = vadd.f32 %v397, %v421
    %v426 = vadd.f32 %v398, %v422
    %v427 = vadd.f32 %v423, %v424
    %v428 = vadd.f32 %v427, %v425
    %v429 = vadd.f32 %v428, %v426
    %430 = vadd.xlane.f32.xlu0 %v429
    %v431 = vpop.xlane.xlu0 %430
    %v432 = vmul.f32 %v423, %v423
    %v433 = vmul.f32 %v424, %v424
    %v434 = vmul.f32 %v425, %v425
    %v435 = vmul.f32 %v426, %v426
    %v436 = vadd.f32 %v432, %v433
    %v437 = vadd.f32 %v436, %v434
    %v438 = vadd.f32 %v437, %v435
    %439 = vadd.xlane.f32.xlu0 %v438
    %v440 = vpop.xlane.xlu0 %439
    %v441 = vmul.f32 %v431, 0.001953125
    %v442 = vmul.f32 %v440, 0.001953125
    %v443 = vmul.f32 %v441, %v441
    %v444 = vsub.f32 %v442, %v443
    %v445 = vmax.f32 %v444, 0.0
    %v446 = vadd.f32 %v445, 1e-05
    %v447 = vrsqrt.pop %v446
    %v448 = vmul.f32 %v38, %v447
    %v449 = vmul.f32 %v441, %v448
    %451 = vrot.lane.b32.xlu0 %v449, 1
    %v452 = vpop.permute.xlu0 %451
    %v454 = vsub.f32 %v38, %v452
    %456 = vset.pattern.permute.xlu0 22
    %457 = vperm.xlu0 %456, %v448
    %v458 = vpop.permute.xlu0 %457
    %v460 = vmul.f32 %v423, %v458
    %v461 = vmul.f32 %v424, %v458
    %v462 = vmul.f32 %v425, %v458
    %v463 = vmul.f32 %v426, %v458
    %465 = vset.pattern.permute.xlu0 23
    %466 = vperm.xlu0 %465, %v454
    %v467 = vpop.permute.xlu0 %466
    %v469 = vadd.f32 %v460, %v467
    %v470 = vadd.f32 %v461, %v467
    %v471 = vadd.f32 %v462, %v467
    %v472 = vadd.f32 %v463, %v467
    %v473 = vmax.f32 %v469, 0.0
    %v474 = vmax.f32 %v470, 0.0
    %v475 = vmax.f32 %v471, 0.0
    %v476 = vmax.f32 %v472, 0.0
    %477 = vset.pattern.permute.xlu0 12
    %478 = vperm.xlu0 %477, %v38
    %v479 = vpop.permute.xlu0 %478
    %v481 = vlaneseq
    %v482 = vshrl.u32 %v481, 7
    %v483 = vsub.s32 0, %v482
    %v484 = vrot.slane %v473, %v483
    %v485 = vlaneseq
    %v486 = vshrl.u32 %v485, 7
    %v487 = vsub.s32 0, %v486
    %v488 = vrot.slane %v474, %v487
    %v489 = vlaneseq
    %v490 = vshrl.u32 %v489, 7
    %v491 = vsub.s32 0, %v490
    %v492 = vrot.slane %v475, %v491
    %v493 = vlaneseq
    %v494 = vshrl.u32 %v493, 7
    %v495 = vsub.s32 0, %v494
    %v496 = vrot.slane %v476, %v495
    %v497 = vmul.f32 %v479, %v484
    %v498 = vmul.f32 %v479, %v488
    %v499 = vmul.f32 %v479, %v492
    %v500 = vmul.f32 %v479, %v496
    %501 = vset.pattern.permute.xlu0 13
    %502 = vperm.xlu0 %501, %v38
    %v503 = vpop.permute.xlu0 %502
    %v505 = vlaneseq
    %v506 = vshrl.u32 %v505, 7
    %v507 = vsub.s32 1, %v506
    %v508 = vrot.slane %v473, %v507
    %v509 = vlaneseq
    %v510 = vshrl.u32 %v509, 7
    %v511 = vsub.s32 1, %v510
    %v512 = vrot.slane %v474, %v511
    %v513 = vlaneseq
    %v514 = vshrl.u32 %v513, 7
    %v515 = vsub.s32 1, %v514
    %v516 = vrot.slane %v475, %v515
    %v517 = vlaneseq
    %v518 = vshrl.u32 %v517, 7
    %v519 = vsub.s32 1, %v518
    %v520 = vrot.slane %v476, %v519
    %v521 = vmul.f32 %v503, %v508
    %v522 = vmul.f32 %v503, %v512
    %v523 = vmul.f32 %v503, %v516
    %v524 = vmul.f32 %v503, %v520
    %v525 = vadd.f32 %v497, %v521
    %v526 = vadd.f32 %v498, %v522
    %v527 = vadd.f32 %v499, %v523
    %v528 = vadd.f32 %v500, %v524
    %529 = vset.pattern.permute.xlu0 14
    %530 = vperm.xlu0 %529, %v38
    %v531 = vpop.permute.xlu0 %530
    %v533 = vlaneseq
    %v534 = vshrl.u32 %v533, 7
    %v535 = vsub.s32 2, %v534
    %v536 = vrot.slane %v473, %v535
    %v537 = vlaneseq
    %v538 = vshrl.u32 %v537, 7
    %v539 = vsub.s32 2, %v538
    %v540 = vrot.slane %v474, %v539
    %v541 = vlaneseq
    %v542 = vshrl.u32 %v541, 7
    %v543 = vsub.s32 2, %v542
    %v544 = vrot.slane %v475, %v543
    %v545 = vlaneseq
    %v546 = vshrl.u32 %v545, 7
    %v547 = vsub.s32 2, %v546
    %v548 = vrot.slane %v476, %v547
    %v549 = vmul.f32 %v531, %v536
    %v550 = vmul.f32 %v531, %v540
    %v551 = vmul.f32 %v531, %v544
    %v552 = vmul.f32 %v531, %v548
    %v553 = vadd.f32 %v525, %v549
    %v554 = vadd.f32 %v526, %v550
    %v555 = vadd.f32 %v527, %v551
    %v556 = vadd.f32 %v528, %v552
    %557 = vset.pattern.permute.xlu0 15
    %558 = vperm.xlu0 %557, %v38
    %v559 = vpop.permute.xlu0 %558
    %v561 = vlaneseq
    %v562 = vshrl.u32 %v561, 7
    %v563 = vsub.s32 3, %v562
    %v564 = vrot.slane %v473, %v563
    %v565 = vlaneseq
    %v566 = vshrl.u32 %v565, 7
    %v567 = vsub.s32 3, %v566
    %v568 = vrot.slane %v474, %v567
    %v569 = vlaneseq
    %v570 = vshrl.u32 %v569, 7
    %v571 = vsub.s32 3, %v570
    %v572 = vrot.slane %v475, %v571
    %v573 = vlaneseq
    %v574 = vshrl.u32 %v573, 7
    %v575 = vsub.s32 3, %v574
    %v576 = vrot.slane %v476, %v575
    %v577 = vmul.f32 %v559, %v564
    %v578 = vmul.f32 %v559, %v568
    %v579 = vmul.f32 %v559, %v572
    %v580 = vmul.f32 %v559, %v576
    %v581 = vadd.f32 %v553, %v577
    %v582 = vadd.f32 %v554, %v578
    %v583 = vadd.f32 %v555, %v579
    %v584 = vadd.f32 %v556, %v580
    %585 = vset.pattern.permute.xlu0 16
    %586 = vperm.xlu0 %585, %v38
    %v587 = vpop.permute.xlu0 %586
    %v589 = vlaneseq
    %v590 = vshrl.u32 %v589, 7
    %v591 = vsub.s32 4, %v590
    %v592 = vrot.slane %v473, %v591
    %v593 = vlaneseq
    %v594 = vshrl.u32 %v593, 7
    %v595 = vsub.s32 4, %v594
    %v596 = vrot.slane %v474, %v595
    %v597 = vlaneseq
    %v598 = vshrl.u32 %v597, 7
    %v599 = vsub.s32 4, %v598
    %v600 = vrot.slane %v475, %v599
    %v601 = vlaneseq
    %v602 = vshrl.u32 %v601, 7
    %v603 = vsub.s32 4, %v602
    %v604 = vrot.slane %v476, %v603
    %v605 = vmul.f32 %v587, %v592
    %v606 = vmul.f32 %v587, %v596
    %v607 = vmul.f32 %v587, %v600
    %v608 = vmul.f32 %v587, %v604
    %v609 = vadd.f32 %v581, %v605
    %v610 = vadd.f32 %v582, %v606
    %v611 = vadd.f32 %v583, %v607
    %v612 = vadd.f32 %v584, %v608
    %613 = vset.pattern.permute.xlu0 17
    %614 = vperm.xlu0 %613, %v38
    %v615 = vpop.permute.xlu0 %614
    %v617 = vlaneseq
    %v618 = vshrl.u32 %v617, 7
    %v619 = vsub.s32 5, %v618
    %v620 = vrot.slane %v473, %v619
    %v621 = vlaneseq
    %v622 = vshrl.u32 %v621, 7
    %v623 = vsub.s32 5, %v622
    %v624 = vrot.slane %v474, %v623
    %v625 = vlaneseq
    %v626 = vshrl.u32 %v625, 7
    %v627 = vsub.s32 5, %v626
    %v628 = vrot.slane %v475, %v627
    %v629 = vlaneseq
    %v630 = vshrl.u32 %v629, 7
    %v631 = vsub.s32 5, %v630
    %v632 = vrot.slane %v476, %v631
    %v633 = vmul.f32 %v615, %v620
    %v634 = vmul.f32 %v615, %v624
    %v635 = vmul.f32 %v615, %v628
    %v636 = vmul.f32 %v615, %v632
    %v637 = vadd.f32 %v609, %v633
    %v638 = vadd.f32 %v610, %v634
    %v639 = vadd.f32 %v611, %v635
    %v640 = vadd.f32 %v612, %v636
    %641 = vset.pattern.permute.xlu0 18
    %642 = vperm.xlu0 %641, %v38
    %v643 = vpop.permute.xlu0 %642
    %v645 = vlaneseq
    %v646 = vshrl.u32 %v645, 7
    %v647 = vsub.s32 6, %v646
    %v648 = vrot.slane %v473, %v647
    %v649 = vlaneseq
    %v650 = vshrl.u32 %v649, 7
    %v651 = vsub.s32 6, %v650
    %v652 = vrot.slane %v474, %v651
    %v653 = vlaneseq
    %v654 = vshrl.u32 %v653, 7
    %v655 = vsub.s32 6, %v654
    %v656 = vrot.slane %v475, %v655
    %v657 = vlaneseq
    %v658 = vshrl.u32 %v657, 7
    %v659 = vsub.s32 6, %v658
    %v660 = vrot.slane %v476, %v659
    %v661 = vmul.f32 %v643, %v648
    %v662 = vmul.f32 %v643, %v652
    %v663 = vmul.f32 %v643, %v656
    %v664 = vmul.f32 %v643, %v660
    %v665 = vadd.f32 %v637, %v661
    %v666 = vadd.f32 %v638, %v662
    %v667 = vadd.f32 %v639, %v663
    %v668 = vadd.f32 %v640, %v664
    %669 = vset.pattern.permute.xlu0 19
    %670 = vperm.xlu0 %669, %v38
    %v671 = vpop.permute.xlu0 %670
    %v673 = vlaneseq
    %v674 = vshrl.u32 %v673, 7
    %v675 = vsub.s32 7, %v674
    %v676 = vrot.slane %v473, %v675
    %v677 = vlaneseq
    %v678 = vshrl.u32 %v677, 7
    %v679 = vsub.s32 7, %v678
    %v680 = vrot.slane %v474, %v679
    %v681 = vlaneseq
    %v682 = vshrl.u32 %v681, 7
    %v683 = vsub.s32 7, %v682
    %v684 = vrot.slane %v475, %v683
    %v685 = vlaneseq
    %v686 = vshrl.u32 %v685, 7
    %v687 = vsub.s32 7, %v686
    %v688 = vrot.slane %v476, %v687
    %v689 = vmul.f32 %v671, %v676
    %v690 = vmul.f32 %v671, %v680
    %v691 = vmul.f32 %v671, %v684
    %v692 = vmul.f32 %v671, %v688
    %v693 = vadd.f32 %v665, %v689
    %v694 = vadd.f32 %v666, %v690
    %v695 = vadd.f32 %v667, %v691
    %v696 = vadd.f32 %v668, %v692
    %v697 = vadd.f32 %v693, %v694
    %v698 = vadd.f32 %v697, %v695
    %v699 = vadd.f32 %v698, %v696
    %700 = vadd.xlane.f32.xlu0 %v699
    %v701 = vpop.xlane.xlu0 %700
    %v702 = vmul.f32 %v693, %v693
    %v703 = vmul.f32 %v694, %v694
    %v704 = vmul.f32 %v695, %v695
    %v705 = vmul.f32 %v696, %v696
    %v706 = vadd.f32 %v702, %v703
    %v707 = vadd.f32 %v706, %v704
    %v708 = vadd.f32 %v707, %v705
    %709 = vadd.xlane.f32.xlu0 %v708
    %v710 = vpop.xlane.xlu0 %709
    %v711 = vmul.f32 %v701, 0.001953125
    %v712 = vmul.f32 %v710, 0.001953125
    %v713 = vmul.f32 %v711, %v711
    %v714 = vsub.f32 %v712, %v713
    %v715 = vmax.f32 %v714, 0.0
    %v716 = vadd.f32 %v715, 1e-05
    %v717 = vrsqrt.pop %v716
    %v718 = vmul.f32 %v38, %v717
    %v719 = vmul.f32 %v711, %v718
    %721 = vrot.lane.b32.xlu0 %v719, 1
    %v722 = vpop.permute.xlu0 %721
    %v724 = vsub.f32 %v38, %v722
    %726 = vset.pattern.permute.xlu0 24
    %727 = vperm.xlu0 %726, %v718
    %v728 = vpop.permute.xlu0 %727
    %v730 = vmul.f32 %v693, %v728
    %v731 = vmul.f32 %v694, %v728
    %v732 = vmul.f32 %v695, %v728
    %v733 = vmul.f32 %v696, %v728
    %735 = vset.pattern.permute.xlu0 25
    %736 = vperm.xlu0 %735, %v724
    %v737 = vpop.permute.xlu0 %736
    %v739 = vadd.f32 %v730, %v737
    %v740 = vadd.f32 %v731, %v737
    %v741 = vadd.f32 %v732, %v737
    %v742 = vadd.f32 %v733, %v737
    %v743 = vmax.f32 %v739, 0.0
    %v744 = vmax.f32 %v740, 0.0
    %v745 = vmax.f32 %v741, 0.0
    %v746 = vmax.f32 %v742, 0.0
    %747 = vst [vmem:[#allocation7] sm:$0xff] %v743
    %748 = vst [vmem:[#allocation7 + $0x8] sm:$0xff] %v744
    %s749 = scalar_lea.vmem [#allocation7], 16
    %750 = vst [vmem:[%s749] sm:$0xff] %v745
    %751 = vst [vmem:[%s749 + $0x8] sm:$0xff] %v746
    // Predicated region
    $region18: #{tpu_custom_call.1} parent=1 // pred_check
      _
    $region19: #{tpu_custom_call.1} parent=1 // pred_check_branch
      %753 = sbr.rel (0) target = $region21
    $region20: #{tpu_custom_call.1} parent=1 // pred_region
      %s755 = ssub.s32 512, 512
      %756 = vsyncadd [#allocation4], %s755
      %s757 = sshll.u32 [#allocation7], 4
      %s758 = int_to_ptr.vmem [resolvable:$true] %s757
      %763 = dma.vmem_to_hbm [thread:$0]  %s758, 512, %s2, [#allocation4], 256, 256, 16
    $region21: #{tpu_custom_call.1} parent=1 // pred_fallthru
      _
    // Predicated region
    $region22: #{tpu_custom_call.1} parent=1 // pred_check
      _
    $region23: #{tpu_custom_call.1} parent=1 // pred_check_branch
      %765 = sbr.rel (0) target = $region25
    $region24: #{tpu_custom_call.1} parent=1 // pred_region
      %766 = dma.done [#allocation4], 512
    $region25: #{tpu_custom_call.1} parent=1 // pred_fallthru
      _
    %767 = vsyncpa [#allocation3], 1
    %768 = vsyncpa [#allocation6], 1
    %769 = vsyncpa [#allocation4], 1

</llo_original>
